<compile_context>
chip_gen: v7x
topology: tpu7x:2x2x1
jax: 0.10.0
libtpu: 0.0.40
codegen_flags: <defaults>
</compile_context>

<pallas_src>
import functools

import jax
import jax.numpy as jnp
from jax.experimental import pallas as pl
from jax.experimental.pallas import tpu as pltpu

PAD_LEN = 30       # pad_len in the PyTorch module (= Conv1d in_channels)
F_PAD = 128        # single lane-dense filter band (holds all 3*F conv filters)
K_MAX = 5          # largest conv kernel size (conv3)


def _round_up(x, m):
    return (x + m - 1) // m * m


# ----------------------- host-side glue (string handling) -----------------------
def _get_alphabet():
    alphabet = [chr(i) for i in range(32, 65)]
    alphabet.extend([chr(i) for i in range(91, 127)])
    return alphabet


ALPHABET = _get_alphabet()
CHAR2ID = {c: i for i, c in enumerate(ALPHABET)}


def word2id(word, pad_len=PAD_LEN):
    # mirrors Character_CNN.word2id, including the try/except -> all-zeros behavior
    try:
        res = [CHAR2ID[ch] for ch in word]
    except KeyError:
        res = [0 for _ in word]
    res = res + (pad_len - len(res)) * [0]
    return res[:pad_len]


def sent_to_ids(sent, pad_len=PAD_LEN):
    return jnp.asarray([word2id(w, pad_len) for w in sent], dtype=jnp.int32)


# ----------------------------- Pallas kernel ------------------------------------
def char_cnn_kernel(x_ref, w_ref, b_ref, pen_ref, o_ref, *, e_pad, n_filters):
    """One grid step processes TILE_N words.

    x_ref   : [TILE_N*e_pad, C_pad]   bf16  rows = (word, embedding position)
    w_ref   : [K_MAX*C_pad, 128]      bf16  im2col RHS; lanes [b*F,(b+1)*F) = conv(b+3)
    b_ref   : [1, 128]                f32   band-packed biases (padded lanes -> 0)
    pen_ref : [e_pad, 128]            f32   0 where (position, band) is valid else -1e30
    o_ref   : [TILE_N, 128]           f32   max-pooled char features
    """
    te, c_pad = x_ref.shape
    t, f_pad = o_ref.shape

    # --- in-kernel im2col ---------------------------------------------------
    # Tap j of a conv needs x[row + j]; build shifted copies of the narrow input
    # and fuse every tap of every conv into ONE matmul with K = K_MAX*C_pad.
    # The sublane rolls are done on an f32 view (32-bit sublane rotate, same op
    # shape the previous working kernel used) and cast back to bf16 once.
    xf = x_ref[...].astype(jnp.float32)                                  # [te, C_pad]
    pieces = [xf] + [pltpu.roll(xf, te - j, axis=0) for j in range(1, K_MAX)]
    xk = jnp.concatenate(pieces, axis=1).astype(jnp.bfloat16)            # [te, K_MAX*C_pad]

    # Fused conv1|conv2|conv3, single 128-lane band, f32 MXU accumulation.
    acc = jnp.dot(xk, w_ref[...], preferred_element_type=jnp.float32)    # [te, 128]

    # Mask invalid / cross-word (roll-wrapped) positions with the precomputed
    # penalty, then take the per-word position max.  The reshape is a pure
    # major-dim split of an (8k, 128)-aligned f32 value (e_pad % 8 == 0), so it
    # is layout-preserving and does not copy.
    acc3 = acc.reshape(t, e_pad, f_pad) + pen_ref[...][None, :, :]       # [t, e_pad, 128]
    m = jnp.max(acc3, axis=1) + b_ref[...]                               # [t, 128]

    # cat along positions + global max_pool1d == max across the three conv
    # bands: bring conv2 / conv3 lanes onto conv1's lanes with two lane rolls.
    r1 = pltpu.roll(m, f_pad - n_filters, axis=1)
    r2 = pltpu.roll(m, f_pad - 2 * n_filters, axis=1)
    o_ref[...] = jnp.maximum(jnp.maximum(m, r1), r2)


def char_cnn_pallas(embedded_ncw, w1, b1, w2, b2, w3, b3, *, tile_n=None):
    """embedded_ncw: [N, pad_len, embed_dim] f32 (PyTorch NCW layout).
    Conv weights in torch layout [F, pad_len, K], biases [F].  Returns [N, F] f32.

    NOTE: activations and conv weights are cast to bf16 for the MXU (accumulation,
    bias and max stay f32) -- a deliberate approximation vs PyTorch f32 Conv1d.
    """
    N, C, E = embedded_ncw.shape
    F_ = w1.shape[0]
    assert E >= K_MAX, "embed_dim must be >= 5 (conv3 kernel size)"
    assert 3 * F_ <= F_PAD, "single-band packing requires 3*n_cnn_filters <= 128"
    assert K_MAX == 5, "position-validity mask derivation assumes K_MAX == 5"

    C_pad = _round_up(C, 8)       # 30 -> 32 : sublane-aligned per-tap contraction dim
    E_pad = _round_up(E, 8)       # keep (word, position) rows sublane-aligned

    # Word tiling: ~4K (word, position) rows per grid step keeps f32 intermediates
    # (acc ~2 MiB) comfortably under v5e's 16 MiB and v7x's 32 MiB scoped-VMEM
    # defaults while amortizing the ~0.35 us per-step overhead.  No forced extra
    # all-padding tile: on single-TC v5e/v6e it would just double runtime.
    if tile_n is None:
        tile_n = max(8, min(512, (4096 // E_pad) // 8 * 8, _round_up(N, 8)))
    tile_n = _round_up(tile_n, 8)
    n_tiles = pl.cdiv(N, tile_n)
    N_pad = n_tiles * tile_n

    # Activations: [N, C, E] -> [N_pad*E_pad, C_pad] bf16, rows = (word, position).
    # TODO(synk): in a real coref pipeline gather the (bf16) char-embedding table
    # directly into this layout (or fuse the gather into the kernel via scalar
    # prefetch of the ids) to avoid these extra HBM transpose/pad passes.
    x = jnp.transpose(embedded_ncw, (0, 2, 1))                           # [N, E, C]
    x = jnp.pad(x, ((0, N_pad - N), (0, E_pad - E), (0, C_pad - C)))
    x2d = x.reshape(N_pad * E_pad, C_pad).astype(jnp.bfloat16)

    # im2col RHS: w_all[j*C_pad + c, band*F + f] = w_band[f, c, j] (0 for j >= K_band).
    w_all = jnp.zeros((K_MAX, C_pad, F_PAD), jnp.float32)
    b_all = jnp.zeros((1, F_PAD), jnp.float32)
    for band, (w, b) in enumerate(((w1, b1), (w2, b2), (w3, b3))):
        k = w.shape[2]
        w_all = w_all.at[:k, :C, band * F_:(band + 1) * F_].set(jnp.transpose(w, (2, 1, 0)))
        b_all = b_all.at[0, band * F_:(band + 1) * F_].set(b)
    w_all = w_all.reshape(K_MAX * C_pad, F_PAD).astype(jnp.bfloat16)     # [160, 128]

    # Position/band validity mask, hoisted out of the kernel.  Band b (= conv with
    # kernel size b+3) is valid for positions l < (E-2) - b; everything else
    # (including roll-wrapped / padded positions) gets -1e30 (safe: conv
    # pre-activations never approach 1e30 in magnitude).
    l_idx = jnp.arange(E_pad)[:, None]
    band = jnp.minimum(jnp.arange(F_PAD)[None, :] // max(F_, 1), 2)
    penalty = jnp.where(l_idx + band < E - 2, 0.0, -1e30).astype(jnp.float32)

    kernel = functools.partial(char_cnn_kernel, e_pad=E_pad, n_filters=F_)

    out = pl.pallas_call(
        kernel,
        out_shape=jax.ShapeDtypeStruct((N_pad, F_PAD), jnp.float32),
        grid=(n_tiles,),
        in_specs=[
            pl.BlockSpec((tile_n * E_pad, C_pad), lambda n: (n, 0)),
            pl.BlockSpec((K_MAX * C_pad, F_PAD), lambda n: (0, 0)),   # resident, no re-DMA
            pl.BlockSpec((1, F_PAD), lambda n: (0, 0)),               # resident
            pl.BlockSpec((E_pad, F_PAD), lambda n: (0, 0)),           # resident
        ],
        out_specs=pl.BlockSpec((tile_n, F_PAD), lambda n: (n, 0)),
        compiler_params=pltpu.CompilerParams(dimension_semantics=("parallel",)),
    )(x2d, w_all, b_all, penalty)
    return out[:N, :F_]


# ------------------------------ pure-JAX reference -------------------------------
def reference_forward(embedded_ncw, w1, b1, w2, b2, w3, b3):
    def conv1d(x, w, b):
        y = jax.lax.conv_general_dilated(
            x, w, window_strides=(1,), padding="VALID",
            dimension_numbers=("NCH", "OIH", "NCH"))
        return y + b[None, :, None]

    c1 = conv1d(embedded_ncw, w1, b1)
    c2 = conv1d(embedded_ncw, w2, b2)
    c3 = conv1d(embedded_ncw, w3, b3)
    out = jnp.concatenate([c1, c2, c3], axis=2)
    return jnp.max(out, axis=2)


# ------------------------------------ main ----------------------------------------
if __name__ == "__main__":
    embed_dim = 16       # conv "length" axis (must be >= 5)
    n_cnn_filters = 8
    sent = ["hello", "world", "this", "is", "a", "pallas", "kernel", "test"]  # N = 8 words

    key = jax.random.PRNGKey(0)
    k_emb, k_w1, k_b1, k_w2, k_b2, k_w3, k_b3 = jax.random.split(key, 7)

    vocab = len(ALPHABET)  # 69
    embed_table = 0.1 * jax.random.normal(k_emb, (vocab, embed_dim), jnp.float32)
    embed_table = embed_table.at[0].set(0.0)   # padding_idx=0

    def conv_params(kw, kb, ksize):
        fan_in = PAD_LEN * ksize
        bound = 1.0 / (fan_in ** 0.5)
        w = jax.random.uniform(kw, (n_cnn_filters, PAD_LEN, ksize), jnp.float32, -bound, bound)
        b = jax.random.uniform(kb, (n_cnn_filters,), jnp.float32, -bound, bound)
        return w, b

    w1, b1 = conv_params(k_w1, k_b1, 3)
    w2, b2 = conv_params(k_w2, k_b2, 4)
    w3, b3 = conv_params(k_w3, k_b3, 5)

    ids = sent_to_ids(sent)                    # [8, 30] int32  (host tokenization glue)
    embedded = embed_table[ids]                # [8, 30, 16] f32 (embedding gather glue)

    out = char_cnn_pallas(embedded, w1, b1, w2, b2, w3, b3)
    out = jax.block_until_ready(out)

    ref = reference_forward(embedded, w1, b1, w2, b2, w3, b3)
    assert out.shape == (len(sent), n_cnn_filters), out.shape
    assert jnp.allclose(out, ref, atol=1e-2, rtol=1e-2), (out, ref)
    print("KERNEL_OK")
</pallas_src>

<mosaic_0001>
module attributes {stable_mosaic.version = 11 : i64} {
  func.func @char_cnn_kernel(%arg0: i32, %arg1: memref<128x32xbf16, #tpu.memory_space<vmem>>, %arg2: memref<160x128xbf16, #tpu.memory_space<vmem>>, %arg3: memref<1x128xf32, #tpu.memory_space<vmem>>, %arg4: memref<16x128xf32, #tpu.memory_space<vmem>>, %arg5: memref<8x128xf32, #tpu.memory_space<vmem>>) attributes {dimension_semantics = [#tpu.dimension_semantics<parallel>], iteration_bounds = array<i64: 1>, scalar_prefetch = 0 : i64, scratch_operands = 0 : i64, tpu.core_type = #tpu.core_type<tc>, window_params = [{transform_indices = @transform_0, window_bounds = array<i64: 128, 32>}, {pipeline_mode = #tpu.pipeline_mode<synchronous>, transform_indices = @transform_1, window_bounds = array<i64: 160, 128>}, {pipeline_mode = #tpu.pipeline_mode<synchronous>, transform_indices = @transform_2, window_bounds = array<i64: 1, 128>}, {pipeline_mode = #tpu.pipeline_mode<synchronous>, transform_indices = @transform_3, window_bounds = array<i64: 16, 128>}, {transform_indices = @transform_4, window_bounds = array<i64: 8, 128>}]} {
    %c0 = arith.constant 0 : index
    %c0_0 = arith.constant 0 : index
    %0 = vector.load %arg1[%c0, %c0_0] : memref<128x32xbf16, #tpu.memory_space<vmem>>, vector<128x32xbf16>
    %1 = arith.extf %0 : vector<128x32xbf16> to vector<128x32xf32>
    %c127_i32 = arith.constant 127 : i32
    %2 = tpu.dynamic_rotate %1 by %c127_i32 dim 0 : vector<128x32xf32>, i32 -> vector<128x32xf32>
    %c126_i32 = arith.constant 126 : i32
    %3 = tpu.dynamic_rotate %1 by %c126_i32 dim 0 : vector<128x32xf32>, i32 -> vector<128x32xf32>
    %c125_i32 = arith.constant 125 : i32
    %4 = tpu.dynamic_rotate %1 by %c125_i32 dim 0 : vector<128x32xf32>, i32 -> vector<128x32xf32>
    %c124_i32 = arith.constant 124 : i32
    %5 = tpu.dynamic_rotate %1 by %c124_i32 dim 0 : vector<128x32xf32>, i32 -> vector<128x32xf32>
    %6 = tpu.concatenate %1, %2, %3, %4, %5 in 1 : vector<128x32xf32>, vector<128x32xf32>, vector<128x32xf32>, vector<128x32xf32>, vector<128x32xf32> -> vector<128x160xf32>
    %7 = arith.truncf %6 : vector<128x160xf32> to vector<128x160xbf16>
    %c0_1 = arith.constant 0 : index
    %c0_2 = arith.constant 0 : index
    %8 = vector.load %arg2[%c0_1, %c0_2] : memref<160x128xbf16, #tpu.memory_space<vmem>>, vector<160x128xbf16>
    %cst = arith.constant dense<0.000000e+00> : vector<128x128xf32>
    %9 = tpu.matmul %7, %8, %cst {dimension_numbers = #tpu.dot_dimension_numbers<[1], [0], [0], [1], [0, 0, 1, 1], [], []>} : vector<128x160xbf16>, vector<160x128xbf16>, vector<128x128xf32> -> vector<128x128xf32>
    %10 = vector.shape_cast %9 : vector<128x128xf32> to vector<8x16x128xf32>
    %c0_3 = arith.constant 0 : index
    %c0_4 = arith.constant 0 : index
    %11 = vector.load %arg4[%c0_3, %c0_4] : memref<16x128xf32, #tpu.memory_space<vmem>>, vector<16x128xf32>
    %12 = vector.shape_cast %11 : vector<16x128xf32> to vector<1x16x128xf32>
    %13 = vector.broadcast %12 : vector<1x16x128xf32> to vector<8x16x128xf32>
    %14 = arith.addf %10, %13 : vector<8x16x128xf32>
    %cst_5 = arith.constant dense<0xFF800000> : vector<8x128xf32>
    %15 = vector.multi_reduction <maximumf>, %14, %cst_5 [1] : vector<8x16x128xf32> to vector<8x128xf32>
    %c0_6 = arith.constant 0 : index
    %c0_7 = arith.constant 0 : index
    %16 = vector.load %arg3[%c0_6, %c0_7] : memref<1x128xf32, #tpu.memory_space<vmem>>, vector<1x128xf32>
    %17 = vector.broadcast %16 : vector<1x128xf32> to vector<8x128xf32>
    %18 = arith.addf %15, %17 : vector<8x128xf32>
    %c120_i32 = arith.constant 120 : i32
    %19 = tpu.dynamic_rotate %18 by %c120_i32 dim 1 : vector<8x128xf32>, i32 -> vector<8x128xf32>
    %c112_i32 = arith.constant 112 : i32
    %20 = tpu.dynamic_rotate %18 by %c112_i32 dim 1 : vector<8x128xf32>, i32 -> vector<8x128xf32>
    %21 = arith.maximumf %18, %19 : vector<8x128xf32>
    %22 = arith.maximumf %21, %20 : vector<8x128xf32>
    %c0_8 = arith.constant 0 : index
    %c0_9 = arith.constant 0 : index
    %23 = vector.load %arg5[%c0_8, %c0_9] : memref<8x128xf32, #tpu.memory_space<vmem>>, vector<8x128xf32>
    tpu.vector_store %arg5[%c0_8, %c0_9], %22 {strides = array<i32>} : memref<8x128xf32, #tpu.memory_space<vmem>>, vector<8x128xf32>,
    return
  }
  func.func @transform_0(%arg0: i32) -> (i32, i32) {
    %c0_i32 = arith.constant 0 : i32
    %c0_i32_0 = arith.constant 0 : i32
    return %arg0, %c0_i32 : i32, i32
  }
  func.func @transform_1(%arg0: i32) -> (i32, i32) {
    %c0_i32 = arith.constant 0 : i32
    %c0_i32_0 = arith.constant 0 : i32
    %c0_i32_1 = arith.constant 0 : i32
    return %c0_i32, %c0_i32_0 : i32, i32
  }
  func.func @transform_2(%arg0: i32) -> (i32, i32) {
    %c0_i32 = arith.constant 0 : i32
    %c0_i32_0 = arith.constant 0 : i32
    %c0_i32_1 = arith.constant 0 : i32
    return %c0_i32, %c0_i32_0 : i32, i32
  }
  func.func @transform_3(%arg0: i32) -> (i32, i32) {
    %c0_i32 = arith.constant 0 : i32
    %c0_i32_0 = arith.constant 0 : i32
    %c0_i32_1 = arith.constant 0 : i32
    return %c0_i32, %c0_i32_0 : i32, i32
  }
  func.func @transform_4(%arg0: i32) -> (i32, i32) {
    %c0_i32 = arith.constant 0 : i32
    %c0_i32_0 = arith.constant 0 : i32
    return %arg0, %c0_i32 : i32, i32
  }
}

</mosaic_0001>

<llo_original>
// kernel: tpu_custom_call.1
$region0: #{tpu_custom_call.1}
  #allocation0 [shape = 'u32[]', space=smem, size = 0x4, offset = 0x4, fixed_abs, tag = 'smem constant byte address 0x4 - core index']
  #allocation1 [shape = 'u32[144,128]{1,0:T(1,128)}', space=vmem, size = 0x12000, scoped, tag = 'internal scratch']
  %s0 = inlined_call_operand.vmem [shape: bf16[128,32], index: 0, kind: input, shape index: {}]
  %s1 = inlined_call_operand.vmem [shape: bf16[160,128], index: 1, kind: input, shape index: {}]
  %s2 = inlined_call_operand.vmem [shape: f32[1,128], index: 2, kind: input, shape index: {}]
  %s3 = inlined_call_operand.hbm [shape: f32[16,128], index: 3, kind: input, shape index: {}]
  %s4 = inlined_call_operand.hbm [shape: f32[8,128], index: 4, kind: output, shape index: {}]
  %s5 = sld [smem:[#allocation0]]
  $region30: #{tpu_custom_call.1} parent=0
    _
  %s7 = ssub.s32 1, %s5
  %s8 = scalar_select 0, %s7, %s5
  $region1: #{tpu_custom_call.1} parent=0
    #allocation2 [shape = 'u8[8192]{0}', space=vmem, size = 0x2000, scoped, tag = 'input window, operand 3, single buffered']
    #allocation3 [shape = 's32[1]{0}', space=sflag, size = 0x4, scoped, tag = 'scoped memory for tpu_custom_call.1']
    #allocation4 [shape = 's32[1]{0}', space=sflag, size = 0x4, scoped, tag = 'scoped memory for tpu_custom_call.1']
    #allocation5 [shape = 'u8[4096]{0}', space=vmem, size = 0x1000, scoped, tag = 'output window, operand 0, single buffered']
    %9 = vsyncpa [#allocation3], 0
    %10 = vsyncpa [#allocation4], 0
    // Predicated region
    $region2: #{tpu_custom_call.1} parent=1 // pred_check
      _
    $region3: #{tpu_custom_call.1} parent=1 // pred_check_branch
      %12 = sbr.rel (0) target = $region5
    $region4: #{tpu_custom_call.1} parent=1 // pred_region
      _
    $region5: #{tpu_custom_call.1} parent=1 // pred_fallthru
      _
    // Predicated region
    $region6: #{tpu_custom_call.1} parent=1 // pred_check
      _
    $region7: #{tpu_custom_call.1} parent=1 // pred_check_branch
      %14 = sbr.rel (0) target = $region9
    $region8: #{tpu_custom_call.1} parent=1 // pred_region
      _
    $region9: #{tpu_custom_call.1} parent=1 // pred_fallthru
      _
    // Predicated region
    $region10: #{tpu_custom_call.1} parent=1 // pred_check
      _
    $region11: #{tpu_custom_call.1} parent=1 // pred_check_branch
      %16 = sbr.rel (0) target = $region13
    $region12: #{tpu_custom_call.1} parent=1 // pred_region
      _
    $region13: #{tpu_custom_call.1} parent=1 // pred_fallthru
      _
    // Predicated region
    $region14: #{tpu_custom_call.1} parent=1 // pred_check
      _
    $region15: #{tpu_custom_call.1} parent=1 // pred_check_branch
      %18 = sbr.rel (0) target = $region17
    $region16: #{tpu_custom_call.1} parent=1 // pred_region
      %s20 = ssub.s32 256, 256
      %21 = vsyncadd [#allocation3], %s20
      %s22 = sshll.u32 [#allocation2], 4
      %s23 = int_to_ptr.vmem [resolvable:$true] %s22
      %28 = dma.hbm_to_vmem [thread:$0]  %s3, 256, %s23, [#allocation3], 128, 128, 8
    $region17: #{tpu_custom_call.1} parent=1 // pred_fallthru
      _
    // Predicated region
    $region18: #{tpu_custom_call.1} parent=1 // pred_check
      _
    $region19: #{tpu_custom_call.1} parent=1 // pred_check_branch
      %30 = sbr.rel (0) target = $region21
    $region20: #{tpu_custom_call.1} parent=1 // pred_region
      %31 = dma.done [#allocation3], 256
    $region21: #{tpu_custom_call.1} parent=1 // pred_fallthru
      _
    %v33 = vld [vmem:[%s0] sm:$0xf]
    %v34 = vld [vmem:[%s0 + $0x4] sm:$0xf]
    %v35 = vld [vmem:[%s0 + $0x8] sm:$0xf]
    %v36 = vld [vmem:[%s0 + $0xc] sm:$0xf]
    %v37 = vld [vmem:[%s0 + $0x10] sm:$0xf]
    %v38 = vld [vmem:[%s0 + $0x14] sm:$0xf]
    %v39 = vld [vmem:[%s0 + $0x18] sm:$0xf]
    %v40 = vld [vmem:[%s0 + $0x1c] sm:$0xf]
    %v41 = vld [vmem:[%s0 + $0x20] sm:$0xf]
    %v42 = vld [vmem:[%s0 + $0x24] sm:$0xf]
    %v43 = vld [vmem:[%s0 + $0x28] sm:$0xf]
    %v44 = vld [vmem:[%s0 + $0x2c] sm:$0xf]
    %v45 = vld [vmem:[%s0 + $0x30] sm:$0xf]
    %v46 = vld [vmem:[%s0 + $0x34] sm:$0xf]
    %v47 = vld [vmem:[%s0 + $0x38] sm:$0xf]
    %v48 = vld [vmem:[%s0 + $0x3c] sm:$0xf]
    %v49 = vunpack.c.l.bf16 %v33
    %v50 = vunpack.c.l.bf16 %v34
    %v51 = vunpack.c.l.bf16 %v35
    %v52 = vunpack.c.l.bf16 %v36
    %v53 = vunpack.c.l.bf16 %v37
    %v54 = vunpack.c.l.bf16 %v38
    %v55 = vunpack.c.l.bf16 %v39
    %v56 = vunpack.c.l.bf16 %v40
    %v57 = vunpack.c.l.bf16 %v41
    %v58 = vunpack.c.l.bf16 %v42
    %v59 = vunpack.c.l.bf16 %v43
    %v60 = vunpack.c.l.bf16 %v44
    %v61 = vunpack.c.l.bf16 %v45
    %v62 = vunpack.c.l.bf16 %v46
    %v63 = vunpack.c.l.bf16 %v47
    %v64 = vunpack.c.l.bf16 %v48
    %v65 = vrot.slane %v49, 1
    %v66 = vrot.slane %v50, 1
    %v67 = vrot.slane %v51, 1
    %v68 = vrot.slane %v52, 1
    %v69 = vrot.slane %v53, 1
    %v70 = vrot.slane %v54, 1
    %v71 = vrot.slane %v55, 1
    %v72 = vrot.slane %v56, 1
    %v73 = vrot.slane %v57, 1
    %v74 = vrot.slane %v58, 1
    %v75 = vrot.slane %v59, 1
    %v76 = vrot.slane %v60, 1
    %v77 = vrot.slane %v61, 1
    %v78 = vrot.slane %v62, 1
    %v79 = vrot.slane %v63, 1
    %v80 = vrot.slane %v64, 1
    %v81 = vlaneseq
    %v82 = vshrl.u32 %v81, 7
    %vm83 = vcmp.lt.s32.totalorder %v82, 7
    %v84 = vsel %vm83, %v79, %v80
    %v85 = vsel %vm83, %v78, %v79
    %v86 = vsel %vm83, %v77, %v78
    %v87 = vsel %vm83, %v76, %v77
    %v88 = vsel %vm83, %v75, %v76
    %v89 = vsel %vm83, %v74, %v75
    %v90 = vsel %vm83, %v73, %v74
    %v91 = vsel %vm83, %v72, %v73
    %v92 = vsel %vm83, %v71, %v72
    %v93 = vsel %vm83, %v70, %v71
    %v94 = vsel %vm83, %v69, %v70
    %v95 = vsel %vm83, %v68, %v69
    %v96 = vsel %vm83, %v67, %v68
    %v97 = vsel %vm83, %v66, %v67
    %v98 = vsel %vm83, %v65, %v66
    %v99 = vsel %vm83, %v80, %v65
    %v100 = vrot.slane %v49, 2
    %v101 = vrot.slane %v50, 2
    %v102 = vrot.slane %v51, 2
    %v103 = vrot.slane %v52, 2
    %v104 = vrot.slane %v53, 2
    %v105 = vrot.slane %v54, 2
    %v106 = vrot.slane %v55, 2
    %v107 = vrot.slane %v56, 2
    %v108 = vrot.slane %v57, 2
    %v109 = vrot.slane %v58, 2
    %v110 = vrot.slane %v59, 2
    %v111 = vrot.slane %v60, 2
    %v112 = vrot.slane %v61, 2
    %v113 = vrot.slane %v62, 2
    %v114 = vrot.slane %v63, 2
    %v115 = vrot.slane %v64, 2
    %vm116 = vcmp.lt.s32.totalorder %v82, 6
    %v117 = vsel %vm116, %v114, %v115
    %v118 = vsel %vm116, %v113, %v114
    %v119 = vsel %vm116, %v112, %v113
    %v120 = vsel %vm116, %v111, %v112
    %v121 = vsel %vm116, %v110, %v111
    %v122 = vsel %vm116, %v109, %v110
    %v123 = vsel %vm116, %v108, %v109
    %v124 = vsel %vm116, %v107, %v108
    %v125 = vsel %vm116, %v106, %v107
    %v126 = vsel %vm116, %v105, %v106
    %v127 = vsel %vm116, %v104, %v105
    %v128 = vsel %vm116, %v103, %v104
    %v129 = vsel %vm116, %v102, %v103
    %v130 = vsel %vm116, %v101, %v102
    %v131 = vsel %vm116, %v100, %v101
    %v132 = vsel %vm116, %v115, %v100
    %v133 = vrot.slane %v49, 3
    %v134 = vrot.slane %v50, 3
    %v135 = vrot.slane %v51, 3
    %v136 = vrot.slane %v52, 3
    %v137 = vrot.slane %v53, 3
    %v138 = vrot.slane %v54, 3
    %v139 = vrot.slane %v55, 3
    %v140 = vrot.slane %v56, 3
    %v141 = vrot.slane %v57, 3
    %v142 = vrot.slane %v58, 3
    %v143 = vrot.slane %v59, 3
    %v144 = vrot.slane %v60, 3
    %v145 = vrot.slane %v61, 3
    %v146 = vrot.slane %v62, 3
    %v147 = vrot.slane %v63, 3
    %v148 = vrot.slane %v64, 3
    %vm149 = vcmp.lt.s32.totalorder %v82, 5
    %v150 = vsel %vm149, %v147, %v148
    %v151 = vsel %vm149, %v146, %v147
    %v152 = vsel %vm149, %v145, %v146
    %v153 = vsel %vm149, %v144, %v145
    %v154 = vsel %vm149, %v143, %v144
    %v155 = vsel %vm149, %v142, %v143
    %v156 = vsel %vm149, %v141, %v142
    %v157 = vsel %vm149, %v140, %v141
    %v158 = vsel %vm149, %v139, %v140
    %v159 = vsel %vm149, %v138, %v139
    %v160 = vsel %vm149, %v137, %v138
    %v161 = vsel %vm149, %v136, %v137
    %v162 = vsel %vm149, %v135, %v136
    %v163 = vsel %vm149, %v134, %v135
    %v164 = vsel %vm149, %v133, %v134
    %v165 = vsel %vm149, %v148, %v133
    %v166 = vrot.slane %v49, 4
    %v167 = vrot.slane %v50, 4
    %v168 = vrot.slane %v51, 4
    %v169 = vrot.slane %v52, 4
    %v170 = vrot.slane %v53, 4
    %v171 = vrot.slane %v54, 4
    %v172 = vrot.slane %v55, 4
    %v173 = vrot.slane %v56, 4
    %v174 = vrot.slane %v57, 4
    %v175 = vrot.slane %v58, 4
    %v176 = vrot.slane %v59, 4
    %v177 = vrot.slane %v60, 4
    %v178 = vrot.slane %v61, 4
    %v179 = vrot.slane %v62, 4
    %v180 = vrot.slane %v63, 4
    %v181 = vrot.slane %v64, 4
    %vm182 = vcmp.lt.s32.totalorder %v82, 4
    %v183 = vsel %vm182, %v180, %v181
    %v184 = vsel %vm182, %v179, %v180
    %v185 = vsel %vm182, %v178, %v179
    %v186 = vsel %vm182, %v177, %v178
    %v187 = vsel %vm182, %v176, %v177
    %v188 = vsel %vm182, %v175, %v176
    %v189 = vsel %vm182, %v174, %v175
    %v190 = vsel %vm182, %v173, %v174
    %v191 = vsel %vm182, %v172, %v173
    %v192 = vsel %vm182, %v171, %v172
    %v193 = vsel %vm182, %v170, %v171
    %v194 = vsel %vm182, %v169, %v170
    %v195 = vsel %vm182, %v168, %v169
    %v196 = vsel %vm182, %v167, %v168
    %v197 = vsel %vm182, %v166, %v167
    %v198 = vsel %vm182, %v181, %v166
    %215 = vrot.lane.b32.xlu0 %v98, 32
    %v216 = vpop.permute.xlu0 %215
    %217 = vrot.lane.b32.xlu0 %v97, 32
    %v218 = vpop.permute.xlu0 %217
    %219 = vrot.lane.b32.xlu0 %v96, 32
    %v220 = vpop.permute.xlu0 %219
    %221 = vrot.lane.b32.xlu0 %v95, 32
    %v222 = vpop.permute.xlu0 %221
    %223 = vrot.lane.b32.xlu0 %v94, 32
    %v224 = vpop.permute.xlu0 %223
    %225 = vrot.lane.b32.xlu0 %v93, 32
    %v226 = vpop.permute.xlu0 %225
    %227 = vrot.lane.b32.xlu0 %v92, 32
    %v228 = vpop.permute.xlu0 %227
    %229 = vrot.lane.b32.xlu0 %v91, 32
    %v230 = vpop.permute.xlu0 %229
    %231 = vrot.lane.b32.xlu0 %v90, 32
    %v232 = vpop.permute.xlu0 %231
    %233 = vrot.lane.b32.xlu0 %v89, 32
    %v234 = vpop.permute.xlu0 %233
    %235 = vrot.lane.b32.xlu0 %v88, 32
    %v236 = vpop.permute.xlu0 %235
    %237 = vrot.lane.b32.xlu0 %v87, 32
    %v238 = vpop.permute.xlu0 %237
    %239 = vrot.lane.b32.xlu0 %v86, 32
    %v240 = vpop.permute.xlu0 %239
    %241 = vrot.lane.b32.xlu0 %v85, 32
    %v242 = vpop.permute.xlu0 %241
    %243 = vrot.lane.b32.xlu0 %v84, 32
    %v244 = vpop.permute.xlu0 %243
    %245 = vrot.lane.b32.xlu0 %v99, 32
    %v246 = vpop.permute.xlu0 %245
    %279 = vrot.lane.b32.xlu0 %v131, 64
    %v280 = vpop.permute.xlu0 %279
    %281 = vrot.lane.b32.xlu0 %v130, 64
    %v282 = vpop.permute.xlu0 %281
    %283 = vrot.lane.b32.xlu0 %v129, 64
    %v284 = vpop.permute.xlu0 %283
    %285 = vrot.lane.b32.xlu0 %v128, 64
    %v286 = vpop.permute.xlu0 %285
    %287 = vrot.lane.b32.xlu0 %v127, 64
    %v288 = vpop.permute.xlu0 %287
    %289 = vrot.lane.b32.xlu0 %v126, 64
    %v290 = vpop.permute.xlu0 %289
    %291 = vrot.lane.b32.xlu0 %v125, 64
    %v292 = vpop.permute.xlu0 %291
    %293 = vrot.lane.b32.xlu0 %v124, 64
    %v294 = vpop.permute.xlu0 %293
    %295 = vrot.lane.b32.xlu0 %v123, 64
    %v296 = vpop.permute.xlu0 %295
    %297 = vrot.lane.b32.xlu0 %v122, 64
    %v298 = vpop.permute.xlu0 %297
    %299 = vrot.lane.b32.xlu0 %v121, 64
    %v300 = vpop.permute.xlu0 %299
    %301 = vrot.lane.b32.xlu0 %v120, 64
    %v302 = vpop.permute.xlu0 %301
    %303 = vrot.lane.b32.xlu0 %v119, 64
    %v304 = vpop.permute.xlu0 %303
    %305 = vrot.lane.b32.xlu0 %v118, 64
    %v306 = vpop.permute.xlu0 %305
    %307 = vrot.lane.b32.xlu0 %v117, 64
    %v308 = vpop.permute.xlu0 %307
    %309 = vrot.lane.b32.xlu0 %v132, 64
    %v310 = vpop.permute.xlu0 %309
    %343 = vrot.lane.b32.xlu0 %v164, 96
    %v344 = vpop.permute.xlu0 %343
    %345 = vrot.lane.b32.xlu0 %v163, 96
    %v346 = vpop.permute.xlu0 %345
    %347 = vrot.lane.b32.xlu0 %v162, 96
    %v348 = vpop.permute.xlu0 %347
    %349 = vrot.lane.b32.xlu0 %v161, 96
    %v350 = vpop.permute.xlu0 %349
    %351 = vrot.lane.b32.xlu0 %v160, 96
    %v352 = vpop.permute.xlu0 %351
    %353 = vrot.lane.b32.xlu0 %v159, 96
    %v354 = vpop.permute.xlu0 %353
    %355 = vrot.lane.b32.xlu0 %v158, 96
    %v356 = vpop.permute.xlu0 %355
    %357 = vrot.lane.b32.xlu0 %v157, 96
    %v358 = vpop.permute.xlu0 %357
    %359 = vrot.lane.b32.xlu0 %v156, 96
    %v360 = vpop.permute.xlu0 %359
    %361 = vrot.lane.b32.xlu0 %v155, 96
    %v362 = vpop.permute.xlu0 %361
    %363 = vrot.lane.b32.xlu0 %v154, 96
    %v364 = vpop.permute.xlu0 %363
    %365 = vrot.lane.b32.xlu0 %v153, 96
    %v366 = vpop.permute.xlu0 %365
    %367 = vrot.lane.b32.xlu0 %v152, 96
    %v368 = vpop.permute.xlu0 %367
    %369 = vrot.lane.b32.xlu0 %v151, 96
    %v370 = vpop.permute.xlu0 %369
    %371 = vrot.lane.b32.xlu0 %v150, 96
    %v372 = vpop.permute.xlu0 %371
    %373 = vrot.lane.b32.xlu0 %v165, 96
    %v374 = vpop.permute.xlu0 %373
    %vm391 = vcmask 261120
    %v392 = vsel %vm391, %v49, %v216
    %v393 = vsel %vm391, %v50, %v218
    %v394 = vsel %vm391, %v51, %v220
    %v395 = vsel %vm391, %v52, %v222
    %v396 = vsel %vm391, %v53, %v224
    %v397 = vsel %vm391, %v54, %v226
    %v398 = vsel %vm391, %v55, %v228
    %v399 = vsel %vm391, %v56, %v230
    %v400 = vsel %vm391, %v57, %v232
    %v401 = vsel %vm391, %v58, %v234
    %v402 = vsel %vm391, %v59, %v236
    %v403 = vsel %vm391, %v60, %v238
    %v404 = vsel %vm391, %v61, %v240
    %v405 = vsel %vm391, %v62, %v242
    %v406 = vsel %vm391, %v63, %v244
    %v407 = vsel %vm391, %v64, %v246
    %vm408 = vcmask 523264
    %v409 = vsel %vm408, %v392, %v280
    %v410 = vsel %vm408, %v393, %v282
    %v411 = vsel %vm408, %v394, %v284
    %v412 = vsel %vm408, %v395, %v286
    %v413 = vsel %vm408, %v396, %v288
    %v414 = vsel %vm408, %v397, %v290
    %v415 = vsel %vm408, %v398, %v292
    %v416 = vsel %vm408, %v399, %v294
    %v417 = vsel %vm408, %v400, %v296
    %v418 = vsel %vm408, %v401, %v298
    %v419 = vsel %vm408, %v402, %v300
    %v420 = vsel %vm408, %v403, %v302
    %v421 = vsel %vm408, %v404, %v304
    %v422 = vsel %vm408, %v405, %v306
    %v423 = vsel %vm408, %v406, %v308
    %v424 = vsel %vm408, %v407, %v310
    %vm425 = vcmask 785408
    %v426 = vsel %vm425, %v409, %v344
    %v427 = vsel %vm425, %v410, %v346
    %v428 = vsel %vm425, %v411, %v348
    %v429 = vsel %vm425, %v412, %v350
    %v430 = vsel %vm425, %v413, %v352
    %v431 = vsel %vm425, %v414, %v354
    %v432 = vsel %vm425, %v415, %v356
    %v433 = vsel %vm425, %v416, %v358
    %v434 = vsel %vm425, %v417, %v360
    %v435 = vsel %vm425, %v418, %v362
    %v436 = vsel %vm425, %v419, %v364
    %v437 = vsel %vm425, %v420, %v366
    %v438 = vsel %vm425, %v421, %v368
    %v439 = vsel %vm425, %v422, %v370
    %v440 = vsel %vm425, %v423, %v372
    %v441 = vsel %vm425, %v424, %v374
    %v442 = vpack.c.bf16 %v427, %v426
    %v443 = vpack.c.bf16 %v196, %v197
    %v444 = vpack.c.bf16 %v429, %v428
    %v445 = vpack.c.bf16 %v194, %v195
    %v446 = vpack.c.bf16 %v431, %v430
    %v447 = vpack.c.bf16 %v192, %v193
    %v448 = vpack.c.bf16 %v433, %v432
    %v449 = vpack.c.bf16 %v190, %v191
    %v450 = vpack.c.bf16 %v435, %v434
    %v451 = vpack.c.bf16 %v188, %v189
    %v452 = vpack.c.bf16 %v437, %v436
    %v453 = vpack.c.bf16 %v186, %v187
    %v454 = vpack.c.bf16 %v439, %v438
    %v455 = vpack.c.bf16 %v184, %v185
    %v456 = vpack.c.bf16 %v441, %v440
    %v457 = vpack.c.bf16 %v198, %v183
    %v458 = vld [vmem:[%s1] sm:$0xf]
    %v459 = vld [vmem:[%s1 + $0x4] sm:$0xf]
    %v460 = vld [vmem:[%s1 + $0x8] sm:$0xf]
    %v461 = vld [vmem:[%s1 + $0xc] sm:$0xf]
    %v462 = vld [vmem:[%s1 + $0x10] sm:$0xf]
    %v463 = vld [vmem:[%s1 + $0x14] sm:$0xf]
    %v464 = vld [vmem:[%s1 + $0x18] sm:$0xf]
    %v465 = vld [vmem:[%s1 + $0x1c] sm:$0xf]
    %v466 = vld [vmem:[%s1 + $0x20] sm:$0xf]
    %v467 = vld [vmem:[%s1 + $0x24] sm:$0xf]
    %v468 = vld [vmem:[%s1 + $0x28] sm:$0xf]
    %v469 = vld [vmem:[%s1 + $0x2c] sm:$0xf]
    %v470 = vld [vmem:[%s1 + $0x30] sm:$0xf]
    %v471 = vld [vmem:[%s1 + $0x34] sm:$0xf]
    %v472 = vld [vmem:[%s1 + $0x38] sm:$0xf]
    %v473 = vld [vmem:[%s1 + $0x3c] sm:$0xf]
    %v474 = vld [vmem:[%s1 + $0x40] sm:$0xf]
    %v475 = vld [vmem:[%s1 + $0x44] sm:$0xf]
    %v476 = vld [vmem:[%s1 + $0x48] sm:$0xf]
    %v477 = vld [vmem:[%s1 + $0x4c] sm:$0xf]
    %v498 = vunpack.c.l.b16 %v458
    %v499 = vunpack.c.l.b16 %v459
    %v500 = vunpack.c.l.b16 %v460
    %v501 = vunpack.c.l.b16 %v461
    %v502 = vunpack.c.l.b16 %v462
    %v503 = vunpack.c.l.b16 %v463
    %v504 = vunpack.c.l.b16 %v464
    %v505 = vunpack.c.l.b16 %v465
    %v506 = vunpack.c.l.b16 %v466
    %v507 = vunpack.c.l.b16 %v467
    %v508 = vunpack.c.l.b16 %v468
    %v509 = vunpack.c.l.b16 %v469
    %v510 = vunpack.c.l.b16 %v470
    %v511 = vunpack.c.l.b16 %v471
    %v512 = vunpack.c.l.b16 %v472
    %v513 = vunpack.c.l.b16 %v473
    %v514 = vunpack.c.l.b16 %v474
    %v515 = vunpack.c.l.b16 %v475
    %v516 = vunpack.c.l.b16 %v476
    %v517 = vunpack.c.l.b16 %v477
    %v518 = vpack.c.b16 %v499, %v498
    %v519 = vpack.c.b16 %v501, %v500
    %v520 = vpack.c.b16 %v503, %v502
    %v521 = vpack.c.b16 %v505, %v504
    %v522 = vpack.c.b16 %v507, %v506
    %v523 = vpack.c.b16 %v509, %v508
    %v524 = vpack.c.b16 %v511, %v510
    %v525 = vpack.c.b16 %v513, %v512
    %v526 = vpack.c.b16 %v515, %v514
    %v527 = vpack.c.b16 %v517, %v516
    %v539 = vsel %vm391, %v443, 0
    %v542 = vsel %vm391, %v445, 0
    %v545 = vsel %vm391, %v447, 0
    %v548 = vsel %vm391, %v449, 0
    %v551 = vsel %vm391, %v451, 0
    %v554 = vsel %vm391, %v453, 0
    %v557 = vsel %vm391, %v455, 0
    %v560 = vsel %vm391, %v457, 0
    %562 = vmatprep.subr.bf16.mxu0 0
    %563 = vmatpush1.bf16.msra.mxu0 %v518
    %564 = vmatprep.subr.bf16.mxu0 0
    %565 = vmatpush1.bf16.msra.mxu0 %v519
    %566 = vmatprep.subr.bf16.mxu0 0
    %567 = vmatpush1.bf16.msra.mxu0 %v520
    %568 = vmatprep.subr.bf16.mxu0 0
    %569 = vmatpush1.bf16.msra.mxu0 %v521
    %570 = vmatprep.subr.bf16.mxu0 0
    %571 = vmatpush1.bf16.msra.mxu0 %v522
    %572 = vmatprep.subr.bf16.mxu0 0
    %573 = vmatpush1.bf16.msra.mxu0 %v523
    %574 = vmatprep.subr.bf16.mxu0 0
    %575 = vmatpush1.bf16.msra.mxu0 %v524
    %576 = vmatprep.subr.bf16.mxu0 0
    %577 = vmatpush1.bf16.msra.mxu0 %v525
    %578 = vmatprep.subr.bf16.mxu0 0
    %579 = vmatpush1.bf16.msra.mxu0 %v526
    %580 = vmatprep.subr.bf16.mxu0 0
    %581 = vmatpush1.bf16.msra.mxu0 %v527
    %582 = vmatprep.subr.bf16.mxu0 0
    %583 = vmatpush1.bf16.msra.mxu0 0
    %584 = vmatprep.subr.bf16.mxu0 0
    %585 = vmatpush1.bf16.msra.mxu0 0
    %586 = vmatprep.subr.bf16.mxu0 0
    %587 = vmatpush1.bf16.msra.mxu0 0
    %588 = vmatprep.subr.bf16.mxu0 0
    %589 = vmatpush1.bf16.msra.mxu0 0
    %590 = vmatprep.subr.bf16.mxu0 0
    %591 = vmatpush1.bf16.msra.mxu0 0
    %592 = vmatprep.subr.bf16.mxu0 0
    %593 = vmatpush1.bf16.msra.mxu0 0
    %594 = vmatprep.mubr.bf16.mxu0 %v539
    %595 = vmatmul.mubr.bf16.gmra.mrb[0].mxu0 %v442
    %v596 = vpop.f32.mrb[0].mxu0
    %v597 = vadd.f32 0.0, %v596
    %v598 = vpop.f32.mrb[0].mxu0
    %v599 = vpop.f32.mrb[0].mxu0
    %v600 = vadd.f32 0.0, %v599
    %v601 = vpop.f32.mrb[0].mxu0
    %602 = vmatprep.mubr.bf16.mxu0 %v542
    %603 = vmatmul.mubr.bf16.gmra.mrb[0].mxu0 %v444
    %v604 = vpop.f32.mrb[0].mxu0
    %v605 = vadd.f32 0.0, %v604
    %v606 = vpop.f32.mrb[0].mxu0
    %v607 = vpop.f32.mrb[0].mxu0
    %v608 = vadd.f32 0.0, %v607
    %v609 = vpop.f32.mrb[0].mxu0
    %610 = vmatprep.mubr.bf16.mxu0 %v545
    %611 = vmatmul.mubr.bf16.gmra.mrb[0].mxu0 %v446
    %v612 = vpop.f32.mrb[0].mxu0
    %v613 = vadd.f32 0.0, %v612
    %v614 = vpop.f32.mrb[0].mxu0
    %v615 = vpop.f32.mrb[0].mxu0
    %v616 = vadd.f32 0.0, %v615
    %v617 = vpop.f32.mrb[0].mxu0
    %618 = vmatprep.mubr.bf16.mxu0 %v548
    %619 = vmatmul.mubr.bf16.gmra.mrb[0].mxu0 %v448
    %v620 = vpop.f32.mrb[0].mxu0
    %v621 = vadd.f32 0.0, %v620
    %v622 = vpop.f32.mrb[0].mxu0
    %v623 = vpop.f32.mrb[0].mxu0
    %v624 = vadd.f32 0.0, %v623
    %v625 = vpop.f32.mrb[0].mxu0
    %626 = vmatprep.mubr.bf16.mxu0 %v551
    %627 = vmatmul.mubr.bf16.gmra.mrb[0].mxu0 %v450
    %v628 = vpop.f32.mrb[0].mxu0
    %v629 = vadd.f32 0.0, %v628
    %v630 = vpop.f32.mrb[0].mxu0
    %v631 = vpop.f32.mrb[0].mxu0
    %v632 = vadd.f32 0.0, %v631
    %v633 = vpop.f32.mrb[0].mxu0
    %634 = vmatprep.mubr.bf16.mxu0 %v554
    %635 = vmatmul.mubr.bf16.gmra.mrb[0].mxu0 %v452
    %v636 = vpop.f32.mrb[0].mxu0
    %v637 = vadd.f32 0.0, %v636
    %v638 = vpop.f32.mrb[0].mxu0
    %v639 = vpop.f32.mrb[0].mxu0
    %v640 = vadd.f32 0.0, %v639
    %v641 = vpop.f32.mrb[0].mxu0
    %642 = vmatprep.mubr.bf16.mxu0 %v557
    %643 = vmatmul.mubr.bf16.gmra.mrb[0].mxu0 %v454
    %v644 = vpop.f32.mrb[0].mxu0
    %v645 = vadd.f32 0.0, %v644
    %v646 = vpop.f32.mrb[0].mxu0
    %v647 = vpop.f32.mrb[0].mxu0
    %v648 = vadd.f32 0.0, %v647
    %v649 = vpop.f32.mrb[0].mxu0
    %650 = vmatprep.mubr.bf16.mxu0 %v560
    %651 = vmatmul.mubr.bf16.gmra.mrb[0].mxu0 %v456
    %v652 = vpop.f32.mrb[0].mxu0
    %v653 = vadd.f32 0.0, %v652
    %v654 = vpop.f32.mrb[0].mxu0
    %v655 = vpop.f32.mrb[0].mxu0
    %v656 = vadd.f32 0.0, %v655
    %v657 = vpop.f32.mrb[0].mxu0
    %658 = vdwg.mxu0
    %v659 = vld [vmem:[#allocation2] sm:$0xff]
    %v660 = vld [vmem:[#allocation2 + $0x8] sm:$0xff]
    %v661 = vadd.f32 %v597, %v659
    %v662 = vadd.f32 %v600, %v660
    %v663 = vadd.f32 %v605, %v659
    %v664 = vadd.f32 %v608, %v660
    %v665 = vadd.f32 %v613, %v659
    %v666 = vadd.f32 %v616, %v660
    %v667 = vadd.f32 %v621, %v659
    %v668 = vadd.f32 %v624, %v660
    %v669 = vadd.f32 %v629, %v659
    %v670 = vadd.f32 %v632, %v660
    %v671 = vadd.f32 %v637, %v659
    %v672 = vadd.f32 %v640, %v660
    %v673 = vadd.f32 %v645, %v659
    %v674 = vadd.f32 %v648, %v660
    %v675 = vadd.f32 %v653, %v659
    %v676 = vadd.f32 %v656, %v660
    %v677 = vmax.f32 %v661, %v662
    %v678 = vrot.slane %v677, 4
    %v679 = vmax.f32 %v677, %v678
    %v680 = vrot.slane %v679, 2
    %v681 = vmax.f32 %v679, %v680
    %v682 = vrot.slane %v681, 1
    %v683 = vmax.f32 %v681, %v682
    %v684 = vmax.f32 %v663, %v664
    %v685 = vrot.slane %v684, 4
    %v686 = vmax.f32 %v684, %v685
    %v687 = vrot.slane %v686, 2
    %v688 = vmax.f32 %v686, %v687
    %v689 = vrot.slane %v688, 1
    %v690 = vmax.f32 %v688, %v689
    %v691 = vmax.f32 %v665, %v666
    %v692 = vrot.slane %v691, 4
    %v693 = vmax.f32 %v691, %v692
    %v694 = vrot.slane %v693, 2
    %v695 = vmax.f32 %v693, %v694
    %v696 = vrot.slane %v695, 1
    %v697 = vmax.f32 %v695, %v696
    %v698 = vmax.f32 %v667, %v668
    %v699 = vrot.slane %v698, 4
    %v700 = vmax.f32 %v698, %v699
    %v701 = vrot.slane %v700, 2
    %v702 = vmax.f32 %v700, %v701
    %v703 = vrot.slane %v702, 1
    %v704 = vmax.f32 %v702, %v703
    %v705 = vmax.f32 %v669, %v670
    %v706 = vrot.slane %v705, 4
    %v707 = vmax.f32 %v705, %v706
    %v708 = vrot.slane %v707, 2
    %v709 = vmax.f32 %v707, %v708
    %v710 = vrot.slane %v709, 1
    %v711 = vmax.f32 %v709, %v710
    %v712 = vmax.f32 %v671, %v672
    %v713 = vrot.slane %v712, 4
    %v714 = vmax.f32 %v712, %v713
    %v715 = vrot.slane %v714, 2
    %v716 = vmax.f32 %v714, %v715
    %v717 = vrot.slane %v716, 1
    %v718 = vmax.f32 %v716, %v717
    %v719 = vmax.f32 %v673, %v674
    %v720 = vrot.slane %v719, 4
    %v721 = vmax.f32 %v719, %v720
    %v722 = vrot.slane %v721, 2
    %v723 = vmax.f32 %v721, %v722
    %v724 = vrot.slane %v723, 1
    %v725 = vmax.f32 %v723, %v724
    %v726 = vmax.f32 %v675, %v676
    %v727 = vrot.slane %v726, 4
    %v728 = vmax.f32 %v726, %v727
    %v729 = vrot.slane %v728, 2
    %v730 = vmax.f32 %v728, %v729
    %v731 = vrot.slane %v730, 1
    %v732 = vmax.f32 %v730, %v731
    %v733 = vld [vmem:[%s2] sm:$0x1]
    %v735 = vlaneseq
    %v736 = vshrl.u32 %v735, 7
    %v737 = vsub.s32 0, %v736
    %v738 = vrot.slane %v733, %v737
    %v740 = vadd.f32 %v683, %v738
    %v741 = vadd.f32 %v690, %v738
    %v742 = vadd.f32 %v697, %v738
    %v743 = vadd.f32 %v704, %v738
    %v744 = vadd.f32 %v711, %v738
    %v745 = vadd.f32 %v718, %v738
    %v746 = vadd.f32 %v725, %v738
    %v747 = vadd.f32 %v732, %v738
    %v756 = vrot.slane %v741, 7
    %vm757 = vcmask 1041409
    %v758 = vsel %vm757, %v756, %v740
    %v759 = vrot.slane %v742, 6
    %vm760 = vcmask 1042434
    %v761 = vsel %vm760, %v759, %v758
    %v762 = vrot.slane %v743, 5
    %vm763 = vcmask 1043459
    %v764 = vsel %vm763, %v762, %v761
    %v765 = vrot.slane %v744, 4
    %vm766 = vcmask 1044484
    %v767 = vsel %vm766, %v765, %v764
    %v768 = vrot.slane %v745, 3
    %vm769 = vcmask 1045509
    %v770 = vsel %vm769, %v768, %v767
    %v771 = vrot.slane %v746, 2
    %vm772 = vcmask 1046534
    %v773 = vsel %vm772, %v771, %v770
    %v774 = vrot.slane %v747, 1
    %vm775 = vcmask 1047559
    %v776 = vsel %vm775, %v774, %v773
    %778 = vrot.lane.b32.xlu0 %v776, 120
    %v779 = vpop.permute.xlu0 %778
    %780 = vrot.lane.b32.xlu0 %v776, 112
    %v781 = vpop.permute.xlu0 %780
    %v783 = vrot.slane %v779, 1
    %v784 = vrot.slane %v779, 2
    %v785 = vrot.slane %v779, 3
    %v786 = vrot.slane %v779, 4
    %v787 = vrot.slane %v779, 5
    %v788 = vrot.slane %v779, 6
    %v789 = vrot.slane %v779, 7
    %v798 = vmax.f32 %v740, %v779
    %v799 = vmax.f32 %v741, %v783
    %v800 = vmax.f32 %v742, %v784
    %v801 = vmax.f32 %v743, %v785
    %v802 = vmax.f32 %v744, %v786
    %v803 = vmax.f32 %v745, %v787
    %v804 = vmax.f32 %v746, %v788
    %v805 = vmax.f32 %v747, %v789
    %v807 = vrot.slane %v781, 1
    %v808 = vrot.slane %v781, 2
    %v809 = vrot.slane %v781, 3
    %v810 = vrot.slane %v781, 4
    %v811 = vrot.slane %v781, 5
    %v812 = vrot.slane %v781, 6
    %v813 = vrot.slane %v781, 7
    %v822 = vmax.f32 %v798, %v781
    %v823 = vmax.f32 %v799, %v807
    %v824 = vmax.f32 %v800, %v808
    %v825 = vmax.f32 %v801, %v809
    %v826 = vmax.f32 %v802, %v810
    %v827 = vmax.f32 %v803, %v811
    %v828 = vmax.f32 %v804, %v812
    %v829 = vmax.f32 %v805, %v813
    %v838 = vrot.slane %v823, 7
    %v839 = vsel %vm757, %v838, %v822
    %v840 = vrot.slane %v824, 6
    %v841 = vsel %vm760, %v840, %v839
    %v842 = vrot.slane %v825, 5
    %v843 = vsel %vm763, %v842, %v841
    %v844 = vrot.slane %v826, 4
    %v845 = vsel %vm766, %v844, %v843
    %v846 = vrot.slane %v827, 3
    %v847 = vsel %vm769, %v846, %v845
    %v848 = vrot.slane %v828, 2
    %v849 = vsel %vm772, %v848, %v847
    %v850 = vrot.slane %v829, 1
    %v851 = vsel %vm775, %v850, %v849
    %853 = vst [vmem:[#allocation5] sm:$0xff] %v851
    // Predicated region
    $region22: #{tpu_custom_call.1} parent=1 // pred_check
      _
    $region23: #{tpu_custom_call.1} parent=1 // pred_check_branch
      %855 = sbr.rel (0) target = $region25
    $region24: #{tpu_custom_call.1} parent=1 // pred_region
      %s857 = ssub.s32 128, 128
      %858 = vsyncadd [#allocation4], %s857
      %s860 = sshll.u32 [#allocation5], 4
      %s861 = int_to_ptr.vmem [resolvable:$true] %s860
      %863 = dma.vmem_to_hbm [thread:$0]  %s861, 128, %s4, [#allocation4]
    $region25: #{tpu_custom_call.1} parent=1 // pred_fallthru
      _
    // Predicated region
    $region26: #{tpu_custom_call.1} parent=1 // pred_check
      _
    $region27: #{tpu_custom_call.1} parent=1 // pred_check_branch
      %865 = sbr.rel (0) target = $region29
    $region28: #{tpu_custom_call.1} parent=1 // pred_region
      %866 = dma.done [#allocation4], 128
    $region29: #{tpu_custom_call.1} parent=1 // pred_fallthru
      _
    %867 = vsyncpa [#allocation3], 1
    %868 = vsyncpa [#allocation4], 1

</llo_original>
